<compile_context>
chip_gen: v7x
topology: tpu7x:2x2x1
jax: 0.10.0
libtpu: 0.0.40
codegen_flags: <defaults>
</compile_context>

<pallas_src>
import functools
import math

import jax
import jax.numpy as jnp
from jax.experimental import pallas as pl
from jax.experimental.pallas import tpu as pltpu


# ----------------------------------------------------------------------------
# Kernel: one (block_rows, D) tile per grid step.
# ----------------------------------------------------------------------------
def _layernorm_kernel(x_ref, a_ref, b_ref, o_ref, *, eps, inv_dm1):
    # x_ref : (block_rows, D) input tile
    # a_ref : (1, D) scale (a_2), b_ref: (1, D) shift (b_2)
    # o_ref : (block_rows, D) output tile
    x = x_ref[...].astype(jnp.float32)
    mean = jnp.mean(x, axis=-1, keepdims=True)                 # (rows, 1)
    xc = x - mean
    # torch.std default is the unbiased estimator: divide by (D - 1).
    var = jnp.sum(xc * xc, axis=-1, keepdims=True) * inv_dm1   # (rows, 1)
    std = jnp.sqrt(var)
    inv = 1.0 / (std + eps)                                    # eps on std (PyTorch formula)
    y = a_ref[...] * (xc * inv) + b_ref[...]
    o_ref[...] = y.astype(o_ref.dtype)


# ----------------------------------------------------------------------------
# Wrapper: flatten leading dims, tile rows, run a single parallel grid.
# ----------------------------------------------------------------------------
@functools.partial(jax.jit, static_argnames=("eps", "block_rows"))
def layernorm(x, a_2, b_2, *, eps=1e-6, block_rows=None):
    """PyTorch-style LayerNorm over the last axis: a_2*(x-mean)/(std+eps)+b_2."""
    orig_shape = x.shape
    d = orig_shape[-1]
    n = math.prod(orig_shape[:-1]) if len(orig_shape) > 1 else 1

    x2 = x.reshape(n, d)
    a2 = jnp.asarray(a_2, jnp.float32).reshape(1, d)
    b2 = jnp.asarray(b_2, jnp.float32).reshape(1, d)

    if block_rows is None:
        # ~2 MiB of input per block; with the output tile and double buffering
        # this stays well inside the default scoped-VMEM budget on all gens.
        target_bytes = 2 * 1024 * 1024
        block_rows = max(1, target_bytes // (d * x2.dtype.itemsize))
    if block_rows >= n:
        block_rows = n                                  # full extent: always legal
    else:
        block_rows = max(8, (block_rows // 8) * 8)      # keep the (8, 128) tiling rule
        block_rows = min(block_rows, n)

    grid = (pl.cdiv(n, block_rows),)
    kernel = functools.partial(
        _layernorm_kernel, eps=float(eps), inv_dm1=1.0 / max(d - 1, 1))

    out2 = pl.pallas_call(
        kernel,
        out_shape=jax.ShapeDtypeStruct((n, d), x.dtype),
        grid=grid,
        in_specs=[
            pl.BlockSpec((block_rows, d), lambda i: (i, 0)),   # x tile
            pl.BlockSpec((1, d), lambda i: (0, 0)),            # a_2 (replicated)
            pl.BlockSpec((1, d), lambda i: (0, 0)),            # b_2 (replicated)
        ],
        out_specs=pl.BlockSpec((block_rows, d), lambda i: (i, 0)),
        compiler_params=pltpu.CompilerParams(
            dimension_semantics=("parallel",)),
    )(x2, a2, b2)
    return out2.reshape(orig_shape)


# ----------------------------------------------------------------------------
# Pure-JAX reference (exact PyTorch semantics) for verification.
# ----------------------------------------------------------------------------
def layernorm_ref(x, a_2, b_2, eps=1e-6):
    mean = x.mean(-1, keepdims=True)
    std = jnp.std(x, axis=-1, keepdims=True, ddof=1)   # torch.std -> unbiased
    return a_2 * (x - mean) / (std + eps) + b_2


if __name__ == "__main__":
    key = jax.random.PRNGKey(0)
    k1, k2, k3, k4 = jax.random.split(key, 4)

    # Small shapes consistent with the module: features=32, batch=2, seq=8.
    B, T, D = 2, 8, 32
    x = jax.random.normal(k1, (B, T, D), jnp.float32)
    a_2 = 1.0 + 0.1 * jax.random.normal(k2, (D,), jnp.float32)   # nn.Parameter(ones)
    b_2 = 0.1 * jax.random.normal(k3, (D,), jnp.float32)         # nn.Parameter(zeros)

    out = layernorm(x, a_2, b_2)
    jax.block_until_ready(out)
    ref = layernorm_ref(x, a_2, b_2)
    assert out.shape == x.shape
    assert jnp.allclose(out, ref, atol=1e-5, rtol=1e-5), \
        float(jnp.max(jnp.abs(out - ref)))

    # Second case exercising a multi-block grid (4 blocks of 64 rows, D=128).
    x_big = jax.random.normal(k4, (4, 64, 128), jnp.float32)
    out_big = layernorm(x_big, jnp.ones((128,), jnp.float32),
                        jnp.zeros((128,), jnp.float32), block_rows=64)
    jax.block_until_ready(out_big)
    ref_big = layernorm_ref(x_big, jnp.ones((128,), jnp.float32),
                            jnp.zeros((128,), jnp.float32))
    assert jnp.allclose(out_big, ref_big, atol=1e-5, rtol=1e-5), \
        float(jnp.max(jnp.abs(out_big - ref_big)))

    print("KERNEL_OK")
</pallas_src>

<mosaic_0001>
module attributes {stable_mosaic.version = 11 : i64} {
  func.func @_layernorm_kernel(%arg0: i32, %arg1: memref<16x32xf32, #tpu.memory_space<vmem>>, %arg2: memref<1x32xf32, #tpu.memory_space<vmem>>, %arg3: memref<1x32xf32, #tpu.memory_space<vmem>>, %arg4: memref<16x32xf32, #tpu.memory_space<vmem>>) attributes {dimension_semantics = [#tpu.dimension_semantics<parallel>], iteration_bounds = array<i64: 1>, scalar_prefetch = 0 : i64, scratch_operands = 0 : i64, tpu.core_type = #tpu.core_type<tc>, window_params = [{transform_indices = @transform_0, window_bounds = array<i64: 16, 32>}, {pipeline_mode = #tpu.pipeline_mode<synchronous>, transform_indices = @transform_1, window_bounds = array<i64: 1, 32>}, {pipeline_mode = #tpu.pipeline_mode<synchronous>, transform_indices = @transform_2, window_bounds = array<i64: 1, 32>}, {transform_indices = @transform_3, window_bounds = array<i64: 16, 32>}]} {
    %c0 = arith.constant 0 : index
    %c0_0 = arith.constant 0 : index
    %0 = vector.load %arg1[%c0, %c0_0] : memref<16x32xf32, #tpu.memory_space<vmem>>, vector<16x32xf32>
    %cst = arith.constant dense<0.000000e+00> : vector<16xf32>
    %1 = vector.multi_reduction <add>, %0, %cst [1] : vector<16x32xf32> to vector<16xf32>
    %2 = vector.shape_cast %1 : vector<16xf32> to vector<16x1xf32>
    %cst_1 = arith.constant 3.200000e+01 : f32
    %3 = vector.broadcast %cst_1 : f32 to vector<16x1xf32>
    %4 = arith.divf %2, %3 : vector<16x1xf32>
    %5 = vector.broadcast %4 : vector<16x1xf32> to vector<16x32xf32>
    %6 = arith.subf %0, %5 : vector<16x32xf32>
    %7 = arith.mulf %6, %6 : vector<16x32xf32>
    %cst_2 = arith.constant dense<0.000000e+00> : vector<16xf32>
    %8 = vector.multi_reduction <add>, %7, %cst_2 [1] : vector<16x32xf32> to vector<16xf32>
    %9 = vector.shape_cast %8 : vector<16xf32> to vector<16x1xf32>
    %cst_3 = arith.constant 0.0322580636 : f32
    %10 = vector.broadcast %cst_3 : f32 to vector<16x1xf32>
    %11 = arith.mulf %9, %10 : vector<16x1xf32>
    %12 = math.sqrt %11 : vector<16x1xf32>
    %cst_4 = arith.constant 9.99999997E-7 : f32
    %13 = vector.broadcast %cst_4 : f32 to vector<16x1xf32>
    %14 = arith.addf %12, %13 : vector<16x1xf32>
    %cst_5 = arith.constant 1.000000e+00 : f32
    %15 = vector.broadcast %cst_5 : f32 to vector<16x1xf32>
    %16 = arith.divf %15, %14 : vector<16x1xf32>
    %c0_6 = arith.constant 0 : index
    %c0_7 = arith.constant 0 : index
    %17 = vector.load %arg2[%c0_6, %c0_7] : memref<1x32xf32, #tpu.memory_space<vmem>>, vector<1x32xf32>
    %18 = vector.broadcast %16 : vector<16x1xf32> to vector<16x32xf32>
    %19 = arith.mulf %6, %18 : vector<16x32xf32>
    %20 = vector.broadcast %17 : vector<1x32xf32> to vector<16x32xf32>
    %21 = arith.mulf %20, %19 : vector<16x32xf32>
    %c0_8 = arith.constant 0 : index
    %c0_9 = arith.constant 0 : index
    %22 = vector.load %arg3[%c0_8, %c0_9] : memref<1x32xf32, #tpu.memory_space<vmem>>, vector<1x32xf32>
    %23 = vector.broadcast %22 : vector<1x32xf32> to vector<16x32xf32>
    %24 = arith.addf %21, %23 : vector<16x32xf32>
    %c0_10 = arith.constant 0 : index
    %c0_11 = arith.constant 0 : index
    %25 = vector.load %arg4[%c0_10, %c0_11] : memref<16x32xf32, #tpu.memory_space<vmem>>, vector<16x32xf32>
    tpu.vector_store %arg4[%c0_10, %c0_11], %24 {strides = array<i32>} : memref<16x32xf32, #tpu.memory_space<vmem>>, vector<16x32xf32>,
    return
  }
  func.func @transform_0(%arg0: i32) -> (i32, i32) {
    %c0_i32 = arith.constant 0 : i32
    %c0_i32_0 = arith.constant 0 : i32
    return %arg0, %c0_i32 : i32, i32
  }
  func.func @transform_1(%arg0: i32) -> (i32, i32) {
    %c0_i32 = arith.constant 0 : i32
    %c0_i32_0 = arith.constant 0 : i32
    %c0_i32_1 = arith.constant 0 : i32
    return %c0_i32, %c0_i32_0 : i32, i32
  }
  func.func @transform_2(%arg0: i32) -> (i32, i32) {
    %c0_i32 = arith.constant 0 : i32
    %c0_i32_0 = arith.constant 0 : i32
    %c0_i32_1 = arith.constant 0 : i32
    return %c0_i32, %c0_i32_0 : i32, i32
  }
  func.func @transform_3(%arg0: i32) -> (i32, i32) {
    %c0_i32 = arith.constant 0 : i32
    %c0_i32_0 = arith.constant 0 : i32
    return %arg0, %c0_i32 : i32, i32
  }
}

</mosaic_0001>

<llo_original>
// kernel: layernorm.1
$region0: #{layernorm.1}
  #allocation0 [shape = 'u32[]', space=smem, size = 0x4, offset = 0x4, fixed_abs, tag = 'smem constant byte address 0x4 - core index']
  #allocation1 [shape = 'u32[144,128]{1,0:T(1,128)}', space=vmem, size = 0x12000, scoped, tag = 'internal scratch']
  %s0 = inlined_call_operand.hbm [shape: f32[16,32], index: 0, kind: input, shape index: {}]
  %s1 = inlined_call_operand.vmem [shape: f32[1,32], index: 1, kind: input, shape index: {}]
  %s2 = inlined_call_operand.vmem [shape: f32[1,32], index: 2, kind: input, shape index: {}]
  %s3 = inlined_call_operand.hbm [shape: f32[16,32], index: 3, kind: output, shape index: {}]
  %s4 = sld [smem:[#allocation0]]
  $region26: #{layernorm.1} parent=0
    _
  %s6 = ssub.s32 1, %s4
  %s7 = scalar_select 0, %s6, %s4
  $region1: #{layernorm.1} parent=0
    #allocation2 [shape = 'u8[8192]{0}', space=vmem, size = 0x2000, scoped, tag = 'input window, operand 0, single buffered']
    #allocation3 [shape = 's32[1]{0}', space=sflag, size = 0x4, scoped, tag = 'scoped memory for layernorm.1']
    #allocation4 [shape = 's32[1]{0}', space=sflag, size = 0x4, scoped, tag = 'scoped memory for layernorm.1']
    #allocation5 [shape = 'u8[8192]{0}', space=vmem, size = 0x2000, scoped, tag = 'output window, operand 0, single buffered']
    %8 = vsyncpa [#allocation3], 0
    %9 = vsyncpa [#allocation4], 0
    // Predicated region
    $region2: #{layernorm.1} parent=1 // pred_check
      _
    $region3: #{layernorm.1} parent=1 // pred_check_branch
      %11 = sbr.rel (0) target = $region5
    $region4: #{layernorm.1} parent=1 // pred_region
      %s13 = ssub.s32 256, 256
      %14 = vsyncadd [#allocation3], %s13
      %s15 = sshll.u32 [#allocation2], 4
      %s16 = int_to_ptr.vmem [resolvable:$true] %s15
      %21 = dma.hbm_to_vmem [thread:$0]  %s0, 256, %s16, [#allocation3], 128, 128, 8
    $region5: #{layernorm.1} parent=1 // pred_fallthru
      _
    // Predicated region
    $region6: #{layernorm.1} parent=1 // pred_check
      _
    $region7: #{layernorm.1} parent=1 // pred_check_branch
      %23 = sbr.rel (0) target = $region9
    $region8: #{layernorm.1} parent=1 // pred_region
      _
    $region9: #{layernorm.1} parent=1 // pred_fallthru
      _
    // Predicated region
    $region10: #{layernorm.1} parent=1 // pred_check
      _
    $region11: #{layernorm.1} parent=1 // pred_check_branch
      %25 = sbr.rel (0) target = $region13
    $region12: #{layernorm.1} parent=1 // pred_region
      _
    $region13: #{layernorm.1} parent=1 // pred_fallthru
      _
    // Predicated region
    $region14: #{layernorm.1} parent=1 // pred_check
      _
    $region15: #{layernorm.1} parent=1 // pred_check_branch
      %27 = sbr.rel (0) target = $region17
    $region16: #{layernorm.1} parent=1 // pred_region
      %28 = dma.done [#allocation3], 256
    $region17: #{layernorm.1} parent=1 // pred_fallthru
      _
    %v29 = vld [vmem:[#allocation2] sm:$0xff]
    %v30 = vld [vmem:[#allocation2 + $0x8] sm:$0xff]
    %vm31 = vcmask 261120
    %v32 = vsel %vm31, %v29, 0.0
    %33 = vadd.xlane.f32.xlu0 %v32
    %v34 = vpop.xlane.xlu0 %33
    %v35 = vsel %vm31, %v30, 0.0
    %36 = vadd.xlane.f32.xlu0 %v35
    %v37 = vpop.xlane.xlu0 %36
    %v38 = vrcp.pop 32.0
    %v39 = vmul.f32 %v34, %v38
    %v40 = vmul.f32 %v37, %v38
    %v41 = vsub.f32 %v29, %v39
    %v42 = vsub.f32 %v30, %v40
    %v43 = vmul.f32 %v41, %v41
    %v44 = vmul.f32 %v42, %v42
    %v45 = vsel %vm31, %v43, 0.0
    %46 = vadd.xlane.f32.xlu0 %v45
    %v47 = vpop.xlane.xlu0 %46
    %v48 = vsel %vm31, %v44, 0.0
    %49 = vadd.xlane.f32.xlu0 %v48
    %v50 = vpop.xlane.xlu0 %49
    %v51 = vmul.f32 %v47, 0.032258064
    %v52 = vmul.f32 %v50, 0.032258064
    %v53 = vrsqrt.pop %v51
    %v54 = vmul.f32 %v51, %v53
    %vm55 = vcmp.eq.f32.partialorder %v51, inf
    %v56 = vsel %vm55, %v51, %v54
    %vm57 = vcmp.eq.f32.partialorder %v51, 0.0
    %v58 = vand.u32 %v51, 2147483648
    %v59 = vsel %vm57, %v58, %v56
    %v60 = vrsqrt.pop %v52
    %v61 = vmul.f32 %v52, %v60
    %vm62 = vcmp.eq.f32.partialorder %v52, inf
    %v63 = vsel %vm62, %v52, %v61
    %vm64 = vcmp.eq.f32.partialorder %v52, 0.0
    %v65 = vand.u32 %v52, 2147483648
    %v66 = vsel %vm64, %v65, %v63
    %v67 = vadd.f32 %v59, 1e-06
    %v68 = vadd.f32 %v66, 1e-06
    %v69 = vrcp.pop %v67
    %v70 = vmul.f32 1.0, %v69
    %v71 = vrcp.pop %v68
    %v72 = vmul.f32 1.0, %v71
    %v73 = vld [vmem:[%s1] sm:$0x1]
    %v74 = vmul.f32 %v41, %v70
    %v75 = vmul.f32 %v42, %v72
    %v77 = vlaneseq
    %v78 = vshrl.u32 %v77, 7
    %v79 = vsub.s32 0, %v78
    %v80 = vrot.slane %v73, %v79
    %v82 = vmul.f32 %v80, %v74
    %v83 = vmul.f32 %v80, %v75
    %v84 = vld [vmem:[%s2] sm:$0x1]
    %v86 = vlaneseq
    %v87 = vshrl.u32 %v86, 7
    %v88 = vsub.s32 0, %v87
    %v89 = vrot.slane %v84, %v88
    %v91 = vadd.f32 %v82, %v89
    %v92 = vadd.f32 %v83, %v89
    %93 = vst.msk [vmem:[#allocation5] sm:$0xff] %vm31, %v91
    %94 = vst.msk [vmem:[#allocation5 + $0x8] sm:$0xff] %vm31, %v92
    // Predicated region
    $region18: #{layernorm.1} parent=1 // pred_check
      _
    $region19: #{layernorm.1} parent=1 // pred_check_branch
      %96 = sbr.rel (0) target = $region21
    $region20: #{layernorm.1} parent=1 // pred_region
      %s98 = ssub.s32 256, 256
      %99 = vsyncadd [#allocation4], %s98
      %s100 = sshll.u32 [#allocation5], 4
      %s101 = int_to_ptr.vmem [resolvable:$true] %s100
      %106 = dma.vmem_to_hbm [thread:$0]  %s101, 256, %s3, [#allocation4], 128, 128, 8
    $region21: #{layernorm.1} parent=1 // pred_fallthru
      _
    // Predicated region
    $region22: #{layernorm.1} parent=1 // pred_check
      _
    $region23: #{layernorm.1} parent=1 // pred_check_branch
      %108 = sbr.rel (0) target = $region25
    $region24: #{layernorm.1} parent=1 // pred_region
      %109 = dma.done [#allocation4], 256
    $region25: #{layernorm.1} parent=1 // pred_fallthru
      _
    %110 = vsyncpa [#allocation3], 1
    %111 = vsyncpa [#allocation4], 1

</llo_original>
